<compile_context>
chip_gen: v5e
topology: v5e:2x2
jax: 0.10.0
libtpu: 0.0.40
codegen_flags: <defaults>
</compile_context>

<pallas_src>
import math

import jax
import jax.numpy as jnp
from jax.experimental import pallas as pl
from jax.experimental.pallas import tpu as pltpu


def _embed_score_kernel(x_ref, wp_ref, bp_ref, ws_ref, bs_ref, h_ref, s_ref):
    # h = x @ Wp + bp  (the nn.Linear projection), f32 accumulation on the MXU.
    h = jnp.dot(x_ref[...], wp_ref[...], preferred_element_type=jnp.float32)
    h = h + bp_ref[...]
    h_ref[...] = h.astype(h_ref.dtype)   # may be bf16 writeback (use_bf16)
    # Fused GraphConv(hidden -> 1) partial scores: one [tile_n, H] @ [H, 2]
    # matmul; column 0 = s_rel (scattered onto edge targets), column 1 =
    # s_root (self term).  bs = [[0, b_rel]] folds the root bias in.
    s_ref[...] = (
        jnp.dot(h, ws_ref[...], preferred_element_type=jnp.float32) + bs_ref[...]
    )


def _round_up(x, m):
    return ((x + m - 1) // m) * m


def _round_down(x, m):
    return (x // m) * m


def _choose_tile_n(n, *, align=8, target=2048, min_tile=256):
    """Return (tile_n, n_pad).

    Small problems (N <= 512) run as a single grid step with tile_n rounded up
    to the sublane multiple.  Larger problems use tiles that are a multiple of
    128 (lane/sublane clean), capped at `target` rows, and small enough to give
    >= 2 grid steps (so both v7x TensorCores get work).  N is padded up to a
    tile multiple instead of requiring an exact divisor.
    """
    if n <= 2 * min_tile:
        t = _round_up(n, align)
        return t, t
    t = _round_down(n // 2, 128)          # guarantees >= 2 steps
    t = max(min_tile, min(target, t))
    return t, _round_up(n, t)


def dummy_mesh_embed_fwd(x, edge_index, batch_idx, params, *, pool_ratio,
                         num_graphs, nodes_per_graph, tile_n=None,
                         use_bf16=False):
    """Forward of DummyMeshEmbed: returns (x_pool, batch_pool).

    x:          [N, F_in] node features (f32, or bf16 if produced upstream)
    edge_index: [E, 2] int32 (src, dst) pairs (the module transposes it itself)
    batch_idx:  [N] int32 graph id per node (contiguous, equal-size graphs)

    use_bf16=True emits the hidden features h in bfloat16 (halves the dominant
    HBM writeback).  No input casts are performed here — cast x / weights at
    data-production time if bf16 MXU inputs are desired.
    """
    N, F_in = x.shape
    H = params["wp"].shape[1]

    align = 16 if x.dtype == jnp.bfloat16 else 8
    if tile_n is None:
        tile_n, n_pad = _choose_tile_n(N, align=align)
    else:
        tile_n = _round_up(tile_n, align)
        n_pad = _round_up(N, tile_n)

    # Pad node rows up to a tile multiple (zero rows; sliced off afterward).
    x_in = x if n_pad == N else jnp.pad(x, ((0, n_pad - N), (0, 0)))

    wp, bp = params["wp"], params["bp"]
    # Fuse the two score weight vectors into one [H, 2] block, bias row [0, b].
    w_score = jnp.concatenate([params["w_rel"], params["w_root"]], axis=1)
    b_score = jnp.concatenate(
        [jnp.zeros((1, 1), jnp.float32), params["b_rel"]], axis=1)

    h_dtype = jnp.bfloat16 if use_bf16 else jnp.float32

    # Honest VMEM budget: double-buffered per-step tiles + (small) weights +
    # a few MiB headroom, clamped well under v7x's 64 MiB physical VMEM/TC.
    per_step_bytes = tile_n * (F_in + H + 2) * 4          # f32 upper bound
    weight_bytes = (F_in * H + H + 2 * H + 2) * 4
    vmem_limit = int(min(2 * per_step_bytes + 2 * weight_bytes + (4 << 20),
                         48 << 20))

    h, scores = pl.pallas_call(
        _embed_score_kernel,
        out_shape=(
            jax.ShapeDtypeStruct((n_pad, H), h_dtype),
            jax.ShapeDtypeStruct((n_pad, 2), jnp.float32),
        ),
        grid_spec=pltpu.PrefetchScalarGridSpec(
            num_scalar_prefetch=0,
            grid=(n_pad // tile_n,),
            in_specs=[
                pl.BlockSpec((tile_n, F_in), lambda i: (i, 0)),   # x tile
                pl.BlockSpec((F_in, H), lambda i: (0, 0)),        # Wp (proj W^T)
                pl.BlockSpec((1, H), lambda i: (0, 0)),           # bp
                pl.BlockSpec((H, 2), lambda i: (0, 0)),           # [w_rel|w_root]
                pl.BlockSpec((1, 2), lambda i: (0, 0)),           # [0, b_rel]
            ],
            out_specs=[
                pl.BlockSpec((tile_n, H), lambda i: (i, 0)),      # h
                pl.BlockSpec((tile_n, 2), lambda i: (i, 0)),      # [s_rel,s_root]
            ],
        ),
        compiler_params=pltpu.CompilerParams(
            dimension_semantics=("parallel",),
            vmem_limit_bytes=vmem_limit,
        ),
    )(x_in, wp, bp, w_score, b_score)

    h = h[:N]
    s_rel = scores[:N, 0]
    s_root = scores[:N, 1]

    # GraphConv 'add' aggregation of messages (src -> dst) and tanh.
    # TODO(synk): at mesh scale, fold this into a Pallas kernel using
    # scalar-prefetched, pre-sorted edge offsets.
    src = edge_index[:, 0]
    dst = edge_index[:, 1]
    agg = jax.ops.segment_sum(s_rel[src], dst, num_segments=N)
    score = jnp.tanh(agg + s_root)

    # SAGPooling top-k ratio selection, vectorized: nodes are contiguous per
    # graph with equal nodes_per_graph, so one top_k over the 2-D reshape
    # replaces the per-graph masked full-length scans.
    k = int(math.ceil(pool_ratio * nodes_per_graph))
    score_2d = score.reshape(num_graphs, nodes_per_graph)
    _, idx = jax.lax.top_k(score_2d, k)                      # [num_graphs, k]
    offsets = (jnp.arange(num_graphs, dtype=idx.dtype) * nodes_per_graph)[:, None]
    perm = (idx + offsets).reshape(-1)

    # Pooled scaling x_pool = h[perm] * score[perm]: at these K the pallas_call
    # launch overhead would dwarf the work, so let XLA fuse the gather + mul.
    x_pool = h[perm] * score[perm][:, None].astype(h.dtype)
    batch_pool = batch_idx[perm]
    return x_pool, batch_pool


if __name__ == "__main__":
    key = jax.random.PRNGKey(0)

    NUM_GRAPHS, NODES_PER_GRAPH = 2, 32
    N = NUM_GRAPHS * NODES_PER_GRAPH            # 64 nodes total
    F_IN, HIDDEN = 16, 32
    POOL_RATIO = 0.5
    E = 128                                     # total edges

    k_x, k_pos, k_e, k_wp, k_wr, k_wo = jax.random.split(key, 6)

    x = jax.random.normal(k_x, (N, F_IN), jnp.float32)
    pos = jax.random.normal(k_pos, (N, 3), jnp.float32)   # unused by the forward
    batch_idx = jnp.repeat(jnp.arange(NUM_GRAPHS, dtype=jnp.int32), NODES_PER_GRAPH)

    # random intra-graph edges, stored as [E, 2] = (src, dst); module does edge_index.T
    e_per = E // NUM_GRAPHS
    edges = []
    for b in range(NUM_GRAPHS):
        kk = jax.random.fold_in(k_e, b)
        e = jax.random.randint(kk, (e_per, 2), 0, NODES_PER_GRAPH) + b * NODES_PER_GRAPH
        edges.append(e)
    edge_index = jnp.concatenate(edges, axis=0).astype(jnp.int32)

    # deterministic parameter init:
    #   proj (nn.Linear(F_IN, HIDDEN)): xavier-uniform weight, zero bias
    bound = math.sqrt(6.0 / (F_IN + HIDDEN))
    wp = jax.random.uniform(k_wp, (F_IN, HIDDEN), jnp.float32, -bound, bound)
    bp = jnp.zeros((1, HIDDEN), jnp.float32)
    #   SAGPooling.gnn = GraphConv(HIDDEN, 1): lin_rel (with bias), lin_root (no bias)
    gbound = math.sqrt(6.0 / (HIDDEN + 1))
    w_rel = jax.random.uniform(k_wr, (HIDDEN, 1), jnp.float32, -gbound, gbound)
    w_root = jax.random.uniform(k_wo, (HIDDEN, 1), jnp.float32, -gbound, gbound)
    b_rel = jnp.zeros((1, 1), jnp.float32)
    params = dict(wp=wp, bp=bp, w_rel=w_rel, w_root=w_root, b_rel=b_rel)

    # f32 path
    x_pool, batch_pool = dummy_mesh_embed_fwd(
        x, edge_index, batch_idx, params,
        pool_ratio=POOL_RATIO, num_graphs=NUM_GRAPHS, nodes_per_graph=NODES_PER_GRAPH)
    jax.block_until_ready((x_pool, batch_pool))

    # pure-JAX reference of the same math (independent per-graph masked top_k)
    h_ref = x @ wp + bp
    agg_ref = jnp.zeros((N,), jnp.float32).at[edge_index[:, 1]].add(
        (h_ref @ w_rel)[edge_index[:, 0], 0])
    score_ref = jnp.tanh(agg_ref + (h_ref @ w_root)[:, 0] + b_rel[0, 0])
    k = int(math.ceil(POOL_RATIO * NODES_PER_GRAPH))
    perms_ref = []
    for b in range(NUM_GRAPHS):
        _, idx = jax.lax.top_k(jnp.where(batch_idx == b, score_ref, -jnp.inf), k)
        perms_ref.append(idx)
    perm_ref = jnp.concatenate(perms_ref)
    x_pool_ref = h_ref[perm_ref] * score_ref[perm_ref][:, None]
    batch_pool_ref = batch_idx[perm_ref]

    assert x_pool.shape == (NUM_GRAPHS * k, HIDDEN)
    assert batch_pool.shape == (NUM_GRAPHS * k,)
    assert jnp.array_equal(batch_pool, batch_pool_ref)
    assert jnp.allclose(x_pool, x_pool_ref, atol=1e-5, rtol=1e-5)

    # bf16-h path (halved h writeback); looser tolerance vs the f32 reference.
    x_pool_bf, batch_pool_bf = dummy_mesh_embed_fwd(
        x, edge_index, batch_idx, params,
        pool_ratio=POOL_RATIO, num_graphs=NUM_GRAPHS, nodes_per_graph=NODES_PER_GRAPH,
        use_bf16=True)
    jax.block_until_ready((x_pool_bf, batch_pool_bf))
    assert x_pool_bf.shape == (NUM_GRAPHS * k, HIDDEN)
    assert jnp.allclose(x_pool_bf.astype(jnp.float32), x_pool_ref, atol=5e-2, rtol=5e-2)

    print("KERNEL_OK")
</pallas_src>

<mosaic_0001>
module attributes {stable_mosaic.version = 11 : i64} {
  func.func @_embed_score_kernel(%arg0: i32, %arg1: memref<64x16xf32, #tpu.memory_space<vmem>>, %arg2: memref<16x32xf32, #tpu.memory_space<vmem>>, %arg3: memref<1x32xf32, #tpu.memory_space<vmem>>, %arg4: memref<32x2xf32, #tpu.memory_space<vmem>>, %arg5: memref<1x2xf32, #tpu.memory_space<vmem>>, %arg6: memref<64x32xf32, #tpu.memory_space<vmem>>, %arg7: memref<64x2xf32, #tpu.memory_space<vmem>>) attributes {dimension_semantics = [#tpu.dimension_semantics<parallel>], iteration_bounds = array<i64: 1>, scalar_prefetch = 0 : i64, scratch_operands = 0 : i64, tpu.core_type = #tpu.core_type<tc>, window_params = [{transform_indices = @transform_0, window_bounds = array<i64: 64, 16>}, {pipeline_mode = #tpu.pipeline_mode<synchronous>, transform_indices = @transform_1, window_bounds = array<i64: 16, 32>}, {pipeline_mode = #tpu.pipeline_mode<synchronous>, transform_indices = @transform_2, window_bounds = array<i64: 1, 32>}, {pipeline_mode = #tpu.pipeline_mode<synchronous>, transform_indices = @transform_3, window_bounds = array<i64: 32, 2>}, {pipeline_mode = #tpu.pipeline_mode<synchronous>, transform_indices = @transform_4, window_bounds = array<i64: 1, 2>}, {transform_indices = @transform_5, window_bounds = array<i64: 64, 32>}, {transform_indices = @transform_6, window_bounds = array<i64: 64, 2>}]} {
    %c0 = arith.constant 0 : index
    %c0_0 = arith.constant 0 : index
    %0 = vector.load %arg1[%c0, %c0_0] : memref<64x16xf32, #tpu.memory_space<vmem>>, vector<64x16xf32>
    %c0_1 = arith.constant 0 : index
    %c0_2 = arith.constant 0 : index
    %1 = vector.load %arg2[%c0_1, %c0_2] : memref<16x32xf32, #tpu.memory_space<vmem>>, vector<16x32xf32>
    %cst = arith.constant dense<0.000000e+00> : vector<64x32xf32>
    %2 = tpu.matmul %0, %1, %cst {dimension_numbers = #tpu.dot_dimension_numbers<[1], [0], [0], [1], [0, 0, 1, 1], [], []>} : vector<64x16xf32>, vector<16x32xf32>, vector<64x32xf32> -> vector<64x32xf32>
    %c0_3 = arith.constant 0 : index
    %c0_4 = arith.constant 0 : index
    %3 = vector.load %arg3[%c0_3, %c0_4] : memref<1x32xf32, #tpu.memory_space<vmem>>, vector<1x32xf32>
    %4 = vector.broadcast %3 : vector<1x32xf32> to vector<64x32xf32>
    %5 = arith.addf %2, %4 : vector<64x32xf32>
    %c0_5 = arith.constant 0 : index
    %c0_6 = arith.constant 0 : index
    %6 = vector.load %arg6[%c0_5, %c0_6] : memref<64x32xf32, #tpu.memory_space<vmem>>, vector<64x32xf32>
    tpu.vector_store %arg6[%c0_5, %c0_6], %5 {strides = array<i32>} : memref<64x32xf32, #tpu.memory_space<vmem>>, vector<64x32xf32>,
    %c0_7 = arith.constant 0 : index
    %c0_8 = arith.constant 0 : index
    %7 = vector.load %arg4[%c0_7, %c0_8] : memref<32x2xf32, #tpu.memory_space<vmem>>, vector<32x2xf32>
    %cst_9 = arith.constant dense<0.000000e+00> : vector<64x2xf32>
    %8 = tpu.matmul %5, %7, %cst_9 {dimension_numbers = #tpu.dot_dimension_numbers<[1], [0], [0], [1], [0, 0, 1, 1], [], []>} : vector<64x32xf32>, vector<32x2xf32>, vector<64x2xf32> -> vector<64x2xf32>
    %c0_10 = arith.constant 0 : index
    %c0_11 = arith.constant 0 : index
    %9 = vector.load %arg5[%c0_10, %c0_11] : memref<1x2xf32, #tpu.memory_space<vmem>>, vector<1x2xf32>
    %10 = vector.broadcast %9 : vector<1x2xf32> to vector<64x2xf32>
    %11 = arith.addf %8, %10 : vector<64x2xf32>
    %c0_12 = arith.constant 0 : index
    %c0_13 = arith.constant 0 : index
    %12 = vector.load %arg7[%c0_12, %c0_13] : memref<64x2xf32, #tpu.memory_space<vmem>>, vector<64x2xf32>
    tpu.vector_store %arg7[%c0_12, %c0_13], %11 {strides = array<i32>} : memref<64x2xf32, #tpu.memory_space<vmem>>, vector<64x2xf32>,
    return
  }
  func.func @transform_0(%arg0: i32) -> (i32, i32) {
    %c0_i32 = arith.constant 0 : i32
    %c0_i32_0 = arith.constant 0 : i32
    return %arg0, %c0_i32 : i32, i32
  }
  func.func @transform_1(%arg0: i32) -> (i32, i32) {
    %c0_i32 = arith.constant 0 : i32
    %c0_i32_0 = arith.constant 0 : i32
    %c0_i32_1 = arith.constant 0 : i32
    return %c0_i32, %c0_i32_0 : i32, i32
  }
  func.func @transform_2(%arg0: i32) -> (i32, i32) {
    %c0_i32 = arith.constant 0 : i32
    %c0_i32_0 = arith.constant 0 : i32
    %c0_i32_1 = arith.constant 0 : i32
    return %c0_i32, %c0_i32_0 : i32, i32
  }
  func.func @transform_3(%arg0: i32) -> (i32, i32) {
    %c0_i32 = arith.constant 0 : i32
    %c0_i32_0 = arith.constant 0 : i32
    %c0_i32_1 = arith.constant 0 : i32
    return %c0_i32, %c0_i32_0 : i32, i32
  }
  func.func @transform_4(%arg0: i32) -> (i32, i32) {
    %c0_i32 = arith.constant 0 : i32
    %c0_i32_0 = arith.constant 0 : i32
    %c0_i32_1 = arith.constant 0 : i32
    return %c0_i32, %c0_i32_0 : i32, i32
  }
  func.func @transform_5(%arg0: i32) -> (i32, i32) {
    %c0_i32 = arith.constant 0 : i32
    %c0_i32_0 = arith.constant 0 : i32
    return %arg0, %c0_i32 : i32, i32
  }
  func.func @transform_6(%arg0: i32) -> (i32, i32) {
    %c0_i32 = arith.constant 0 : i32
    %c0_i32_0 = arith.constant 0 : i32
    return %arg0, %c0_i32 : i32, i32
  }
}

</mosaic_0001>

<llo_original>
// kernel: tpu_custom_call.1
$region0: #{tpu_custom_call.1}
  #allocation0 [shape = 'u32[]', space=smem, size = 0x4, offset = 0x4, fixed_abs, tag = 'smem constant byte address 0x4 - core index']
  #allocation1 [shape = 'u32[72,128]{1,0:T(1,128)}', space=vmem, size = 0x9000, scoped, tag = 'internal scratch']
  %s0 = inlined_call_operand.vmem [shape: f32[64,16], index: 0, kind: input, shape index: {}]
  %s1 = inlined_call_operand.vmem [shape: f32[16,32], index: 1, kind: input, shape index: {}]
  %s2 = inlined_call_operand.vmem [shape: f32[1,32], index: 2, kind: input, shape index: {}]
  %s3 = inlined_call_operand.vmem [shape: f32[32,2], index: 3, kind: input, shape index: {}]
  %s4 = inlined_call_operand.vmem [shape: f32[1,2], index: 4, kind: input, shape index: {}]
  %s5 = inlined_call_operand.vmem [shape: f32[64,32], index: 5, kind: output, shape index: {0}]
  %s6 = inlined_call_operand.vmem [shape: f32[64,2], index: 6, kind: output, shape index: {1}]
  %7 = xla_tuple %s5, %s6
  %s8 = sld [smem:[#allocation0]]
  $region38: #{tpu_custom_call.1} parent=0
    _
  %s10 = ssub.s32 1, %s8
  %s11 = scalar_select 0, %s10, %s8
  // Predicated region
  $region2: #{tpu_custom_call.1} parent=0 // pred_check
    _
  $region3: #{tpu_custom_call.1} parent=0 // pred_check_branch
    %13 = sbr.rel (0) target = $region5
  $region4: #{tpu_custom_call.1} parent=0 // pred_region
    _
  $region5: #{tpu_custom_call.1} parent=0 // pred_fallthru
    _
  // Predicated region
  $region6: #{tpu_custom_call.1} parent=0 // pred_check
    _
  $region7: #{tpu_custom_call.1} parent=0 // pred_check_branch
    %15 = sbr.rel (0) target = $region9
  $region8: #{tpu_custom_call.1} parent=0 // pred_region
    _
  $region9: #{tpu_custom_call.1} parent=0 // pred_fallthru
    _
  // Predicated region
  $region10: #{tpu_custom_call.1} parent=0 // pred_check
    _
  $region11: #{tpu_custom_call.1} parent=0 // pred_check_branch
    %17 = sbr.rel (0) target = $region13
  $region12: #{tpu_custom_call.1} parent=0 // pred_region
    _
  $region13: #{tpu_custom_call.1} parent=0 // pred_fallthru
    _
  // Predicated region
  $region14: #{tpu_custom_call.1} parent=0 // pred_check
    _
  $region15: #{tpu_custom_call.1} parent=0 // pred_check_branch
    %19 = sbr.rel (0) target = $region17
  $region16: #{tpu_custom_call.1} parent=0 // pred_region
    _
  $region17: #{tpu_custom_call.1} parent=0 // pred_fallthru
    _
  // Predicated region
  $region18: #{tpu_custom_call.1} parent=0 // pred_check
    _
  $region19: #{tpu_custom_call.1} parent=0 // pred_check_branch
    %21 = sbr.rel (0) target = $region21
  $region20: #{tpu_custom_call.1} parent=0 // pred_region
    _
  $region21: #{tpu_custom_call.1} parent=0 // pred_fallthru
    _
  %v22 = vld [vmem:[%s0] sm:$0xff]
  %v23 = vld [vmem:[%s0 + $0x8] sm:$0xff]
  %v24 = vld [vmem:[%s0 + $0x10] sm:$0xff]
  %v25 = vld [vmem:[%s0 + $0x18] sm:$0xff]
  %v26 = vld [vmem:[%s0 + $0x20] sm:$0xff]
  %v27 = vld [vmem:[%s0 + $0x28] sm:$0xff]
  %v28 = vld [vmem:[%s0 + $0x30] sm:$0xff]
  %v29 = vld [vmem:[%s0 + $0x38] sm:$0xff]
  %v30 = vld [vmem:[%s1] sm:$0xff]
  %v31 = vld [vmem:[%s1 + $0x8] sm:$0xff]
  %v32 = vld [vmem:[%s2] sm:$0x1]
  %v34 = vperm.slane %v32, 0
  %vm36 = vcmask 130048
  %v38 = vsel %vm36, %v22, 0
  %v41 = vsel %vm36, %v23, 0
  %v44 = vsel %vm36, %v24, 0
  %v47 = vsel %vm36, %v25, 0
  %v50 = vsel %vm36, %v26, 0
  %v53 = vsel %vm36, %v27, 0
  %v56 = vsel %vm36, %v28, 0
  %v59 = vsel %vm36, %v29, 0
  %61 = vmatpush.msra.mxu0 0.0
  %62 = vmatpush.msra.mxu0 0.0
  %63 = vmatpush.msra.mxu0 0.0
  %64 = vmatpush.msra.mxu0 0.0
  %65 = vmatpush.msra.mxu0 0.0
  %66 = vmatpush.msra.mxu0 0.0
  %67 = vmatpush.msra.mxu0 0.0
  %68 = vmatpush.msra.mxu0 0.0
  %69 = vmatpush.msra.mxu0 0.0
  %70 = vmatpush.msra.mxu0 0.0
  %71 = vmatpush.msra.mxu0 0.0
  %72 = vmatpush.msra.mxu0 0.0
  %73 = vmatpush.msra.mxu0 0.0
  %74 = vmatpush.msra.mxu0 0.0
  %75 = vmatpush.msra.mxu0 %v31
  %76 = vmatpush.msra.mxu0 %v30
  %77 = vmatmul.f32.gmra.mxu0 %v38
  %v78 = vpop.f32.mrf.mxu0
  %v79 = vadd.f32 %v34, %v78
  %80 = vmatmul.f32.gmra.mxu0 %v41
  %v81 = vpop.f32.mrf.mxu0
  %v82 = vadd.f32 %v34, %v81
  %83 = vmatmul.f32.gmra.mxu0 %v44
  %v84 = vpop.f32.mrf.mxu0
  %v85 = vadd.f32 %v34, %v84
  %86 = vmatmul.f32.gmra.mxu0 %v47
  %v87 = vpop.f32.mrf.mxu0
  %v88 = vadd.f32 %v34, %v87
  %89 = vmatmul.f32.gmra.mxu0 %v50
  %v90 = vpop.f32.mrf.mxu0
  %v91 = vadd.f32 %v34, %v90
  %92 = vmatmul.f32.gmra.mxu0 %v53
  %v93 = vpop.f32.mrf.mxu0
  %v94 = vadd.f32 %v34, %v93
  %95 = vmatmul.f32.gmra.mxu0 %v56
  %v96 = vpop.f32.mrf.mxu0
  %v97 = vadd.f32 %v34, %v96
  %98 = vmatmul.f32.gmra.mxu0 %v59
  %v99 = vpop.f32.mrf.mxu0
  %v100 = vadd.f32 %v34, %v99
  %101 = vdwg.mxu0
  %vm102 = vcmask 261120
  %103 = vst.msk [vmem:[%s5] sm:$0xff] %vm102, %v79
  %104 = vst.msk [vmem:[%s5 + $0x8] sm:$0xff] %vm102, %v82
  %105 = vst.msk [vmem:[%s5 + $0x10] sm:$0xff] %vm102, %v85
  %106 = vst.msk [vmem:[%s5 + $0x18] sm:$0xff] %vm102, %v88
  %107 = vst.msk [vmem:[%s5 + $0x20] sm:$0xff] %vm102, %v91
  %108 = vst.msk [vmem:[%s5 + $0x28] sm:$0xff] %vm102, %v94
  %109 = vst.msk [vmem:[%s5 + $0x30] sm:$0xff] %vm102, %v97
  %110 = vst.msk [vmem:[%s5 + $0x38] sm:$0xff] %vm102, %v100
  %v111 = vld [vmem:[%s3] sm:$0xff]
  %v112 = vld [vmem:[%s3 + $0x8] sm:$0xff]
  %v113 = vld [vmem:[%s3 + $0x10] sm:$0xff]
  %v114 = vld [vmem:[%s3 + $0x18] sm:$0xff]
  %v115 = vld [vmem:[%s4] sm:$0x1]
  %v117 = vperm.slane %v115, 0
  %v120 = vsel %vm102, %v79, 0
  %v123 = vsel %vm102, %v82, 0
  %v126 = vsel %vm102, %v85, 0
  %v129 = vsel %vm102, %v88, 0
  %v132 = vsel %vm102, %v91, 0
  %v135 = vsel %vm102, %v94, 0
  %v138 = vsel %vm102, %v97, 0
  %v141 = vsel %vm102, %v100, 0
  %143 = vmatpush.msra.mxu0 0.0
  %144 = vmatpush.msra.mxu0 0.0
  %145 = vmatpush.msra.mxu0 0.0
  %146 = vmatpush.msra.mxu0 0.0
  %147 = vmatpush.msra.mxu0 0.0
  %148 = vmatpush.msra.mxu0 0.0
  %149 = vmatpush.msra.mxu0 0.0
  %150 = vmatpush.msra.mxu0 0.0
  %151 = vmatpush.msra.mxu0 0.0
  %152 = vmatpush.msra.mxu0 0.0
  %153 = vmatpush.msra.mxu0 0.0
  %154 = vmatpush.msra.mxu0 0.0
  %155 = vmatpush.msra.mxu0 %v114
  %156 = vmatpush.msra.mxu0 %v113
  %157 = vmatpush.msra.mxu0 %v112
  %158 = vmatpush.msra.mxu0 %v111
  %159 = vmatmul.f32.gmra.mxu0 %v120
  %v160 = vpop.f32.mrf.mxu0
  %v161 = vadd.f32 %v117, %v160
  %162 = vmatmul.f32.gmra.mxu0 %v123
  %v163 = vpop.f32.mrf.mxu0
  %v164 = vadd.f32 %v117, %v163
  %165 = vmatmul.f32.gmra.mxu0 %v126
  %v166 = vpop.f32.mrf.mxu0
  %v167 = vadd.f32 %v117, %v166
  %168 = vmatmul.f32.gmra.mxu0 %v129
  %v169 = vpop.f32.mrf.mxu0
  %v170 = vadd.f32 %v117, %v169
  %171 = vmatmul.f32.gmra.mxu0 %v132
  %v172 = vpop.f32.mrf.mxu0
  %v173 = vadd.f32 %v117, %v172
  %174 = vmatmul.f32.gmra.mxu0 %v135
  %v175 = vpop.f32.mrf.mxu0
  %v176 = vadd.f32 %v117, %v175
  %177 = vmatmul.f32.gmra.mxu0 %v138
  %v178 = vpop.f32.mrf.mxu0
  %v179 = vadd.f32 %v117, %v178
  %180 = vmatmul.f32.gmra.mxu0 %v141
  %v181 = vpop.f32.mrf.mxu0
  %v182 = vadd.f32 %v117, %v181
  %183 = vdwg.mxu0
  %vm184 = vcmask 15360
  %185 = vst.msk [vmem:[%s6] sm:$0xff] %vm184, %v161
  %186 = vst.msk [vmem:[%s6 + $0x8] sm:$0xff] %vm184, %v164
  %187 = vst.msk [vmem:[%s6 + $0x10] sm:$0xff] %vm184, %v167
  %188 = vst.msk [vmem:[%s6 + $0x18] sm:$0xff] %vm184, %v170
  %189 = vst.msk [vmem:[%s6 + $0x20] sm:$0xff] %vm184, %v173
  %190 = vst.msk [vmem:[%s6 + $0x28] sm:$0xff] %vm184, %v176
  %191 = vst.msk [vmem:[%s6 + $0x30] sm:$0xff] %vm184, %v179
  %192 = vst.msk [vmem:[%s6 + $0x38] sm:$0xff] %vm184, %v182
  // Predicated region
  $region22: #{tpu_custom_call.1} parent=0 // pred_check
    _
  $region23: #{tpu_custom_call.1} parent=0 // pred_check_branch
    %194 = sbr.rel (0) target = $region25
  $region24: #{tpu_custom_call.1} parent=0 // pred_region
    _
  $region25: #{tpu_custom_call.1} parent=0 // pred_fallthru
    _
  // Predicated region
  $region26: #{tpu_custom_call.1} parent=0 // pred_check
    _
  $region27: #{tpu_custom_call.1} parent=0 // pred_check_branch
    %196 = sbr.rel (0) target = $region29
  $region28: #{tpu_custom_call.1} parent=0 // pred_region
    _
  $region29: #{tpu_custom_call.1} parent=0 // pred_fallthru
    _
  // Predicated region
  $region30: #{tpu_custom_call.1} parent=0 // pred_check
    _
  $region31: #{tpu_custom_call.1} parent=0 // pred_check_branch
    %198 = sbr.rel (0) target = $region33
  $region32: #{tpu_custom_call.1} parent=0 // pred_region
    _
  $region33: #{tpu_custom_call.1} parent=0 // pred_fallthru
    _
  // Predicated region
  $region34: #{tpu_custom_call.1} parent=0 // pred_check
    _
  $region35: #{tpu_custom_call.1} parent=0 // pred_check_branch
    %200 = sbr.rel (0) target = $region37
  $region36: #{tpu_custom_call.1} parent=0 // pred_region
    _
  $region37: #{tpu_custom_call.1} parent=0 // pred_fallthru
    _

</llo_original>
